<compile_context>
chip_gen: v5e
topology: v5e:2x2
jax: 0.10.0
libtpu: 0.0.40
codegen_flags: <defaults>
</compile_context>

<pallas_src>
import jax
import jax.numpy as jnp
from jax.experimental import pallas as pl
from jax.experimental.pallas import tpu as pltpu

KH, KW = 2, 2  # kernel_size = 2


def _pick_group(n, cin, cout):
    """Images fused per matmul.

    Largest G with KH*KW*G*Cin <= 256 (one MXU pass width on v6e/v7x) whose
    row counts G*Cin and G*Cout fill whole 8-sublane tiles (tile-aligned tap
    concat, legal BlockSpec rows when the grid has >1 step).  Fallback: all
    images in one block (block dims == full array dims is always legal).
    """
    g_cap = max(1, 256 // (KH * KW * cin))
    for g in range(min(n, g_cap), 0, -1):
        if (g * cin) % 8 == 0 and (g * cout) % 8 == 0:
            return g
    return n


def preconv_forward(x_nchw, weight, bias):
    """PreConv forward: Conv2d(k=2, s=1, p=1) + ReLU.  NCHW in, NCHW out.

    x_nchw : (N, Cin, H, W)  float32
    weight : (Cout, Cin, KH, KW)
    bias   : (Cout,)
    returns: (N, Cout, H+1, W+1)
    """
    N, Cin, H, W = x_nchw.shape
    Cout = weight.shape[0]
    Ho, Wo = H + 1, W + 1          # output spatial size for k=2, s=1, p=1
    Mo = Ho * Wo                   # flattened output pixels per image
    Mf = (H + 3) * Wo              # flattened zero-bordered input per image
    Mp = pl.cdiv(Mf, 128) * 128    # lane-aligned working width

    # With a zero border of 1 top row, 2 bottom rows and 1 left column, and
    # row stride Wo = W+1, conv tap (kh, kw) is a pure left-shift of the
    # flattened input by kh*Wo + kw (the missing right zero of a kw=1 tap is
    # supplied by the next row's left zero column).
    shifts = (0, 1, Wo, Wo + 1)    # tap order t = kh*KW + kw

    # Roll-wraparound safety: lanes wrapped by roll(Mp - s) land at columns
    # >= Mp - (Wo + 1); they must fall outside the Mo valid output columns.
    assert Mp - (Wo + 1) >= Mo, "padding scheme violates roll-wrap safety"
    # Largest input index read by a valid output column stays inside Mf.
    assert Mo + Wo < Mf

    G = _pick_group(N, Cin, Cout)
    N_pad = pl.cdiv(N, G) * G      # remainder handling: zero-pad the batch
    grid = (N_pad // G,)
    Kf = KH * KW * G * Cin         # fused contraction dim

    # ---- wrapper-side prep (cheap XLA pads / free row-major reshapes) -----
    # (N, Cin, H, W) -> (N_pad, Cin, H+3, Wo): batch pad + zero border.
    xq = jnp.pad(x_nchw.astype(jnp.float32),
                 ((0, N_pad - N), (0, 0), (1, 2), (1, 0)))
    # -> (N_pad, Cin, Mp): lane-align the flat spatial axis (kills the old
    # in-kernel staging buffer; aligned HBM->VMEM DMA rows).
    x_flat = jnp.pad(xq.reshape(N_pad, Cin, Mf),
                     ((0, 0), (0, 0), (0, Mp - Mf)))
    x_flat = x_flat.reshape(N_pad * Cin, Mp)            # free reshape

    # Block-diagonal fused weight:
    #   W_blk[(i, o), (t, j, c)] = weight[o, c, kh_t, kw_t] * delta(i, j)
    w_t = jnp.transpose(weight.astype(jnp.float32), (2, 3, 0, 1))
    w_t = w_t.reshape(KH * KW, Cout, Cin)               # (t, o, c)
    eye = jnp.eye(G, dtype=jnp.float32)
    w_fused = jnp.einsum("toc,ij->iotjc", w_t, eye).reshape(G * Cout, Kf)
    b_fused = jnp.tile(bias.astype(jnp.float32), G).reshape(G * Cout, 1)

    # ---- kernel ------------------------------------------------------------
    def kernel(x_ref, w_ref, b_ref, o_ref):
        x = x_ref[...]                                   # (G*Cin, Mp)
        # Tap t: shift the whole slab left by s along lanes (XLU roll).
        taps = [x if s == 0 else pltpu.roll(x, Mp - s, axis=1)
                for s in shifts]
        patch = jnp.concatenate(taps, axis=0)            # (Kf, Mp), tile-aligned
        acc = jnp.dot(w_ref[...], patch,
                      preferred_element_type=jnp.float32)  # (G*Cout, Mp)
        # Bias + ReLU, once per grid step; lane-dense store of the full slab.
        o_ref[...] = jnp.maximum(acc + b_ref[...], 0.0).astype(o_ref.dtype)

    out_flat = pl.pallas_call(
        kernel,
        out_shape=jax.ShapeDtypeStruct((N_pad * Cout, Mp), jnp.float32),
        grid_spec=pltpu.PrefetchScalarGridSpec(
            num_scalar_prefetch=0,
            grid=grid,
            in_specs=[
                pl.BlockSpec((G * Cin, Mp), lambda n: (n, 0)),
                pl.BlockSpec((G * Cout, Kf), lambda n: (0, 0)),
                pl.BlockSpec((G * Cout, 1), lambda n: (0, 0)),
            ],
            out_specs=pl.BlockSpec((G * Cout, Mp), lambda n: (n, 0)),
        ),
        compiler_params=pltpu.CompilerParams(
            dimension_semantics=("parallel",)),
    )(x_flat, w_fused, b_fused)

    # Lane-dense kernel output -> slice off lane padding / batch padding in
    # XLA, then free reshape back to NCHW.
    out = out_flat.reshape(N_pad, Cout, Mp)[:N, :, :Mo]
    return out.reshape(N, Cout, Ho, Wo)


def _reference_forward(x_nchw, weight, bias):
    """Pure-JAX reference: NCHW conv (k=2, s=1, p=1) + bias + ReLU."""
    y = jax.lax.conv_general_dilated(
        x_nchw, weight,
        window_strides=(1, 1),
        padding=((1, 1), (1, 1)),
        dimension_numbers=("NCHW", "OIHW", "NCHW"))
    y = y + bias.reshape(1, -1, 1, 1)
    return jnp.maximum(y, 0.0)


if __name__ == "__main__":
    key = jax.random.PRNGKey(0)
    kx, kw_key, kb_key = jax.random.split(key, 3)

    N, Cin, H, W = 2, 4, 16, 16
    Cout = 8

    x = jax.random.normal(kx, (N, Cin, H, W), dtype=jnp.float32)
    # Deterministic synthetic parameters (PyTorch Conv2d weight/bias shapes).
    fan_in = Cin * KH * KW
    bound = 1.0 / (fan_in ** 0.5)
    weight = jax.random.uniform(kw_key, (Cout, Cin, KH, KW),
                                minval=-bound, maxval=bound,
                                dtype=jnp.float32)
    bias = jax.random.uniform(kb_key, (Cout,), minval=-bound, maxval=bound,
                              dtype=jnp.float32)

    out = jax.block_until_ready(preconv_forward(x, weight, bias))
    ref = jax.block_until_ready(_reference_forward(x, weight, bias))

    assert out.shape == (N, Cout, H + 1, W + 1), out.shape
    max_err = float(jnp.max(jnp.abs(out - ref)))
    assert jnp.allclose(out, ref, atol=1e-5, rtol=1e-5), max_err

    print("KERNEL_OK")
</pallas_src>

<mosaic_0001>
module attributes {stable_mosaic.version = 11 : i64} {
  func.func @kernel(%arg0: i32, %arg1: memref<8x384xf32, #tpu.memory_space<vmem>>, %arg2: memref<16x32xf32, #tpu.memory_space<vmem>>, %arg3: memref<16x1xf32, #tpu.memory_space<vmem>>, %arg4: memref<16x384xf32, #tpu.memory_space<vmem>>) attributes {dimension_semantics = [#tpu.dimension_semantics<parallel>], iteration_bounds = array<i64: 1>, scalar_prefetch = 0 : i64, scratch_operands = 0 : i64, tpu.core_type = #tpu.core_type<tc>, window_params = [{transform_indices = @transform_0, window_bounds = array<i64: 8, 384>}, {pipeline_mode = #tpu.pipeline_mode<synchronous>, transform_indices = @transform_1, window_bounds = array<i64: 16, 32>}, {pipeline_mode = #tpu.pipeline_mode<synchronous>, transform_indices = @transform_2, window_bounds = array<i64: 16, 1>}, {transform_indices = @transform_3, window_bounds = array<i64: 16, 384>}]} {
    %c0 = arith.constant 0 : index
    %c0_0 = arith.constant 0 : index
    %0 = vector.load %arg1[%c0, %c0_0] : memref<8x384xf32, #tpu.memory_space<vmem>>, vector<8x384xf32>
    %c383_i32 = arith.constant 383 : i32
    %1 = tpu.dynamic_rotate %0 by %c383_i32 dim 1 : vector<8x384xf32>, i32 -> vector<8x384xf32>
    %c367_i32 = arith.constant 367 : i32
    %2 = tpu.dynamic_rotate %0 by %c367_i32 dim 1 : vector<8x384xf32>, i32 -> vector<8x384xf32>
    %c366_i32 = arith.constant 366 : i32
    %3 = tpu.dynamic_rotate %0 by %c366_i32 dim 1 : vector<8x384xf32>, i32 -> vector<8x384xf32>
    %4 = tpu.concatenate %0, %1, %2, %3 in 0 : vector<8x384xf32>, vector<8x384xf32>, vector<8x384xf32>, vector<8x384xf32> -> vector<32x384xf32>
    %c0_1 = arith.constant 0 : index
    %c0_2 = arith.constant 0 : index
    %5 = vector.load %arg2[%c0_1, %c0_2] : memref<16x32xf32, #tpu.memory_space<vmem>>, vector<16x32xf32>
    %cst = arith.constant dense<0.000000e+00> : vector<16x384xf32>
    %6 = tpu.matmul %5, %4, %cst {dimension_numbers = #tpu.dot_dimension_numbers<[1], [0], [0], [1], [0, 0, 1, 1], [], []>} : vector<16x32xf32>, vector<32x384xf32>, vector<16x384xf32> -> vector<16x384xf32>
    %c0_3 = arith.constant 0 : index
    %c0_4 = arith.constant 0 : index
    %7 = vector.load %arg3[%c0_3, %c0_4] : memref<16x1xf32, #tpu.memory_space<vmem>>, vector<16x1xf32>
    %8 = vector.broadcast %7 : vector<16x1xf32> to vector<16x384xf32>
    %9 = arith.addf %6, %8 : vector<16x384xf32>
    %cst_5 = arith.constant 0.000000e+00 : f32
    %10 = vector.broadcast %cst_5 : f32 to vector<16x384xf32>
    %11 = arith.maximumf %9, %10 : vector<16x384xf32>
    %c0_6 = arith.constant 0 : index
    %c0_7 = arith.constant 0 : index
    %12 = vector.load %arg4[%c0_6, %c0_7] : memref<16x384xf32, #tpu.memory_space<vmem>>, vector<16x384xf32>
    tpu.vector_store %arg4[%c0_6, %c0_7], %11 {strides = array<i32>} : memref<16x384xf32, #tpu.memory_space<vmem>>, vector<16x384xf32>,
    return
  }
  func.func @transform_0(%arg0: i32) -> (i32, i32) {
    %c0_i32 = arith.constant 0 : i32
    %c0_i32_0 = arith.constant 0 : i32
    return %arg0, %c0_i32 : i32, i32
  }
  func.func @transform_1(%arg0: i32) -> (i32, i32) {
    %c0_i32 = arith.constant 0 : i32
    %c0_i32_0 = arith.constant 0 : i32
    %c0_i32_1 = arith.constant 0 : i32
    return %c0_i32, %c0_i32_0 : i32, i32
  }
  func.func @transform_2(%arg0: i32) -> (i32, i32) {
    %c0_i32 = arith.constant 0 : i32
    %c0_i32_0 = arith.constant 0 : i32
    %c0_i32_1 = arith.constant 0 : i32
    return %c0_i32, %c0_i32_0 : i32, i32
  }
  func.func @transform_3(%arg0: i32) -> (i32, i32) {
    %c0_i32 = arith.constant 0 : i32
    %c0_i32_0 = arith.constant 0 : i32
    return %arg0, %c0_i32 : i32, i32
  }
}

</mosaic_0001>

<llo_original>
// kernel: tpu_custom_call.1
$region0: #{tpu_custom_call.1}
  #allocation0 [shape = 'u32[]', space=smem, size = 0x4, offset = 0x4, fixed_abs, tag = 'smem constant byte address 0x4 - core index']
  #allocation1 [shape = 'u32[72,128]{1,0:T(1,128)}', space=vmem, size = 0x9000, scoped, tag = 'internal scratch']
  %s0 = inlined_call_operand.hbm [shape: f32[8,384], index: 0, kind: input, shape index: {}]
  %s1 = inlined_call_operand.vmem [shape: f32[16,32], index: 1, kind: input, shape index: {}]
  %s2 = inlined_call_operand.vmem [shape: f32[16,1], index: 2, kind: input, shape index: {}]
  %s3 = inlined_call_operand.hbm [shape: f32[16,384], index: 3, kind: output, shape index: {}]
  %s4 = sld [smem:[#allocation0]]
  $region26: #{tpu_custom_call.1} parent=0
    _
  %s6 = ssub.s32 1, %s4
  %s7 = scalar_select 0, %s6, %s4
  $region1: #{tpu_custom_call.1} parent=0
    #allocation2 [shape = 'u8[12288]{0}', space=vmem, size = 0x3000, scoped, tag = 'input window, operand 0, single buffered']
    #allocation3 [shape = 's32[1]{0}', space=sflag, size = 0x4, scoped, tag = 'scoped memory for tpu_custom_call.1']
    #allocation4 [shape = 's32[1]{0}', space=sflag, size = 0x4, scoped, tag = 'scoped memory for tpu_custom_call.1']
    #allocation5 [shape = 'u8[24576]{0}', space=vmem, size = 0x6000, scoped, tag = 'output window, operand 0, single buffered']
    %8 = vsyncpa [#allocation3], 0
    %9 = vsyncpa [#allocation4], 0
    // Predicated region
    $region2: #{tpu_custom_call.1} parent=1 // pred_check
      _
    $region3: #{tpu_custom_call.1} parent=1 // pred_check_branch
      %11 = sbr.rel (0) target = $region5
    $region4: #{tpu_custom_call.1} parent=1 // pred_region
      %13 = vsyncadd [#allocation3], 0
      %s15 = sshll.u32 %s0, 4
      %s16 = int_to_ptr.hbm [resolvable:$true] %s15
      %s17 = sshll.u32 [#allocation2], 4
      %s18 = int_to_ptr.vmem [resolvable:$true] %s17
      %20 = dma.hbm_to_vmem [thread:$0]  %s16, 384, %s18, [#allocation3]
    $region5: #{tpu_custom_call.1} parent=1 // pred_fallthru
      _
    // Predicated region
    $region6: #{tpu_custom_call.1} parent=1 // pred_check
      _
    $region7: #{tpu_custom_call.1} parent=1 // pred_check_branch
      %22 = sbr.rel (0) target = $region9
    $region8: #{tpu_custom_call.1} parent=1 // pred_region
      _
    $region9: #{tpu_custom_call.1} parent=1 // pred_fallthru
      _
    // Predicated region
    $region10: #{tpu_custom_call.1} parent=1 // pred_check
      _
    $region11: #{tpu_custom_call.1} parent=1 // pred_check_branch
      %24 = sbr.rel (0) target = $region13
    $region12: #{tpu_custom_call.1} parent=1 // pred_region
      _
    $region13: #{tpu_custom_call.1} parent=1 // pred_fallthru
      _
    // Predicated region
    $region14: #{tpu_custom_call.1} parent=1 // pred_check
      _
    $region15: #{tpu_custom_call.1} parent=1 // pred_check_branch
      %26 = sbr.rel (0) target = $region17
    $region16: #{tpu_custom_call.1} parent=1 // pred_region
      %28 = dma.done [#allocation3], 384
    $region17: #{tpu_custom_call.1} parent=1 // pred_fallthru
      _
    %v29 = vld [vmem:[#allocation2] sm:$0xff]
    %v30 = vld [vmem:[#allocation2 + $0x8] sm:$0xff]
    %v31 = vld [vmem:[#allocation2 + $0x10] sm:$0xff]
    %32 = vrot.lane.b32.xlu0 %v29, 127
    %v33 = vpop.permute.xlu0 %32
    %34 = vrot.lane.b32.xlu0 %v30, 127
    %v35 = vpop.permute.xlu0 %34
    %36 = vrot.lane.b32.xlu0 %v31, 127
    %v37 = vpop.permute.xlu0 %36
    %v38 = vlaneseq
    %v39 = vand.u32 %v38, 127
    %vm40 = vcmp.lt.s32.totalorder %v39, 127
    %v41 = vsel %vm40, %v35, %v37
    %v42 = vsel %vm40, %v33, %v35
    %v43 = vsel %vm40, %v37, %v33
    %44 = vrot.lane.b32.xlu0 %v29, 111
    %v45 = vpop.permute.xlu0 %44
    %46 = vrot.lane.b32.xlu0 %v30, 111
    %v47 = vpop.permute.xlu0 %46
    %48 = vrot.lane.b32.xlu0 %v31, 111
    %v49 = vpop.permute.xlu0 %48
    %vm50 = vcmp.lt.s32.totalorder %v39, 111
    %v51 = vsel %vm50, %v47, %v49
    %v52 = vsel %vm50, %v45, %v47
    %v53 = vsel %vm50, %v49, %v45
    %54 = vrot.lane.b32.xlu0 %v29, 110
    %v55 = vpop.permute.xlu0 %54
    %56 = vrot.lane.b32.xlu0 %v30, 110
    %v57 = vpop.permute.xlu0 %56
    %58 = vrot.lane.b32.xlu0 %v31, 110
    %v59 = vpop.permute.xlu0 %58
    %vm60 = vcmp.lt.s32.totalorder %v39, 110
    %v61 = vsel %vm60, %v57, %v59
    %v62 = vsel %vm60, %v55, %v57
    %v63 = vsel %vm60, %v59, %v55
    %v64 = vld [vmem:[%s1] sm:$0xff]
    %v65 = vld [vmem:[%s1 + $0x8] sm:$0xff]
    %v66 = vld [vmem:[%s2] sm:$0xff]
    %v67 = vld [vmem:[%s2 + $0x8] sm:$0xff]
    %69 = vset.pattern.permute.xlu0 0
    %70 = vperm.xlu0 %69, %v66
    %v71 = vpop.permute.xlu0 %70
    %74 = vset.pattern.permute.xlu0 0
    %75 = vperm.xlu0 %74, %v67
    %v76 = vpop.permute.xlu0 %75
    %vm78 = vcmask 261120
    %v80 = vsel %vm78, %v64, 0
    %v83 = vsel %vm78, %v65, 0
    %85 = vmatpush.msra.mxu0 0.0
    %86 = vmatpush.msra.mxu0 0.0
    %87 = vmatpush.msra.mxu0 0.0
    %88 = vmatpush.msra.mxu0 0.0
    %89 = vmatpush.msra.mxu0 0.0
    %90 = vmatpush.msra.mxu0 0.0
    %91 = vmatpush.msra.mxu0 0.0
    %92 = vmatpush.msra.mxu0 0.0
    %93 = vmatpush.msra.mxu0 0.0
    %94 = vmatpush.msra.mxu0 0.0
    %95 = vmatpush.msra.mxu0 0.0
    %96 = vmatpush.msra.mxu0 0.0
    %97 = vmatpush.msra.mxu0 %v62
    %98 = vmatpush.msra.mxu0 %v52
    %99 = vmatpush.msra.mxu0 %v42
    %100 = vmatpush.msra.mxu0 %v29
    %101 = vmatmul.f32.gmra.mxu0 %v80
    %v102 = vpop.f32.mrf.mxu0
    %v103 = vadd.f32 %v71, %v102
    %104 = vmatmul.f32.gmra.mxu0 %v83
    %v105 = vpop.f32.mrf.mxu0
    %v106 = vadd.f32 %v76, %v105
    %107 = vdwg.mxu0
    %108 = vmatpush.msra.mxu0 0.0
    %109 = vmatpush.msra.mxu0 0.0
    %110 = vmatpush.msra.mxu0 0.0
    %111 = vmatpush.msra.mxu0 0.0
    %112 = vmatpush.msra.mxu0 0.0
    %113 = vmatpush.msra.mxu0 0.0
    %114 = vmatpush.msra.mxu0 0.0
    %115 = vmatpush.msra.mxu0 0.0
    %116 = vmatpush.msra.mxu0 0.0
    %117 = vmatpush.msra.mxu0 0.0
    %118 = vmatpush.msra.mxu0 0.0
    %119 = vmatpush.msra.mxu0 0.0
    %120 = vmatpush.msra.mxu0 %v61
    %121 = vmatpush.msra.mxu0 %v51
    %122 = vmatpush.msra.mxu0 %v41
    %123 = vmatpush.msra.mxu0 %v30
    %124 = vmatmul.f32.gmra.mxu0 %v80
    %v125 = vpop.f32.mrf.mxu0
    %v126 = vadd.f32 %v71, %v125
    %127 = vmatmul.f32.gmra.mxu0 %v83
    %v128 = vpop.f32.mrf.mxu0
    %v129 = vadd.f32 %v76, %v128
    %130 = vdwg.mxu0
    %131 = vmatpush.msra.mxu0 0.0
    %132 = vmatpush.msra.mxu0 0.0
    %133 = vmatpush.msra.mxu0 0.0
    %134 = vmatpush.msra.mxu0 0.0
    %135 = vmatpush.msra.mxu0 0.0
    %136 = vmatpush.msra.mxu0 0.0
    %137 = vmatpush.msra.mxu0 0.0
    %138 = vmatpush.msra.mxu0 0.0
    %139 = vmatpush.msra.mxu0 0.0
    %140 = vmatpush.msra.mxu0 0.0
    %141 = vmatpush.msra.mxu0 0.0
    %142 = vmatpush.msra.mxu0 0.0
    %143 = vmatpush.msra.mxu0 %v63
    %144 = vmatpush.msra.mxu0 %v53
    %145 = vmatpush.msra.mxu0 %v43
    %146 = vmatpush.msra.mxu0 %v31
    %147 = vmatmul.f32.gmra.mxu0 %v80
    %v148 = vpop.f32.mrf.mxu0
    %v149 = vadd.f32 %v71, %v148
    %150 = vmatmul.f32.gmra.mxu0 %v83
    %v151 = vpop.f32.mrf.mxu0
    %v152 = vadd.f32 %v76, %v151
    %153 = vdwg.mxu0
    %v154 = vmax.f32 %v103, 0.0
    %v155 = vmax.f32 %v126, 0.0
    %v156 = vmax.f32 %v149, 0.0
    %v157 = vmax.f32 %v106, 0.0
    %v158 = vmax.f32 %v129, 0.0
    %v159 = vmax.f32 %v152, 0.0
    %160 = vst [vmem:[#allocation5] sm:$0xff] %v154
    %161 = vst [vmem:[#allocation5 + $0x8] sm:$0xff] %v155
    %162 = vst [vmem:[#allocation5 + $0x10] sm:$0xff] %v156
    %163 = vst [vmem:[#allocation5 + $0x18] sm:$0xff] %v157
    %164 = vst [vmem:[#allocation5 + $0x20] sm:$0xff] %v158
    %165 = vst [vmem:[#allocation5 + $0x28] sm:$0xff] %v159
    // Predicated region
    $region18: #{tpu_custom_call.1} parent=1 // pred_check
      _
    $region19: #{tpu_custom_call.1} parent=1 // pred_check_branch
      %167 = sbr.rel (0) target = $region21
    $region20: #{tpu_custom_call.1} parent=1 // pred_region
      %169 = vsyncadd [#allocation4], 0
      %s170 = sshll.u32 [#allocation5], 4
      %s171 = int_to_ptr.vmem [resolvable:$true] %s170
      %s172 = sshll.u32 %s3, 4
      %s173 = int_to_ptr.hbm [resolvable:$true] %s172
      %178 = dma.vmem_to_hbm [thread:$0]  %s171, 768, %s173, [#allocation4], 384, 384, 24
    $region21: #{tpu_custom_call.1} parent=1 // pred_fallthru
      _
    // Predicated region
    $region22: #{tpu_custom_call.1} parent=1 // pred_check
      _
    $region23: #{tpu_custom_call.1} parent=1 // pred_check_branch
      %180 = sbr.rel (0) target = $region25
    $region24: #{tpu_custom_call.1} parent=1 // pred_region
      %182 = dma.done [#allocation4], 768
    $region25: #{tpu_custom_call.1} parent=1 // pred_fallthru
      _
    %183 = vsyncpa [#allocation3], 1
    %184 = vsyncpa [#allocation4], 1

</llo_original>
